<compile_context>
chip_gen: v7x
topology: tpu7x:2x2x1
jax: 0.10.0
libtpu: 0.0.40
codegen_flags: <defaults>
</compile_context>

<pallas_src>
import jax
import jax.numpy as jnp
from jax.experimental import pallas as pl
from jax.experimental.pallas import tpu as pltpu


# ---------------- model hyper-parameters (small, consistent with the module) --------
NUM_JOINTS_IN = 16
IN_FEATURES = 2          # 2D keypoints in
NUM_JOINTS_OUT = 16
FILTER_WIDTHS = [3]      # odd, as asserted by the module
CHANNELS = 32
DROPOUT = 0.25           # identity at inference time

B = 2                    # batch
T = 8                    # input frames

C_IN = NUM_JOINTS_IN * IN_FEATURES          # 32
FW = FILTER_WIDTHS[0]                       # 3
T_OUT = T - FW + 1                          # valid conv output length (6)
C_OUT = NUM_JOINTS_OUT * 3                  # 48
DENSE_ROWS = B * T - FW + 1                 # 14: im2col rows over the flat (B*T) axis
                                            # (FW-1 of them straddle a batch boundary and
                                            #  are computed but never stored)

# ---------------- packed-parameter layout (one DMA instead of four) -----------------
# All segments start at lane 0 and on 8-row (sublane) boundaries so every in-kernel
# slice is a cheap aligned static slice.
W1_ROW = 0                                  # rows [0, 96)   : w1, tap-major, 32 lanes
B1_ROW = FW * C_IN                          # row  96        : b1, 32 lanes
W2_ROW = B1_ROW + 8                         # rows [104,136) : w2, 48 lanes
B2_ROW = W2_ROW + CHANNELS                  # row  136       : b2, 48 lanes
P_ROWS = B2_ROW + 8                         # 144 rows total
P_LANES = max(CHANNELS, C_OUT)              # 48


# ---------------- Pallas kernel: conv1d(valid) + ReLU + 1x1 conv --------------------
def _temporal_block_kernel(x_ref, p_ref, o_ref):
    # x_ref : (B*T, C_IN)        time-major rows, channels on lanes
    # p_ref : (P_ROWS, P_LANES)  packed {w1 | b1 | w2 | b2} slab (see layout above)
    # o_ref : (B, T_OUT, C_OUT)  final output layout (permute-back already folded in)

    # Expand conv as FW accumulated MXU matmuls (no lane-axis im2col relayout).
    # Tap k multiplies the input rows shifted by k with weight rows [k*C_IN,(k+1)*C_IN).
    h = jnp.dot(x_ref[0:DENSE_ROWS, :],
                p_ref[W1_ROW:W1_ROW + C_IN, 0:CHANNELS],
                preferred_element_type=jnp.float32)
    for k in range(1, FW):                                  # static unroll (FW = 3)
        h = h + jnp.dot(x_ref[k:k + DENSE_ROWS, :],
                        p_ref[W1_ROW + k * C_IN:W1_ROW + (k + 1) * C_IN, 0:CHANNELS],
                        preferred_element_type=jnp.float32)

    # bias + ReLU in f32 on the VPU.
    h = jnp.maximum(h + p_ref[B1_ROW:B1_ROW + 1, 0:CHANNELS], 0.0)   # (DENSE_ROWS, 32)

    # 1x1 shrink conv as a second matmul.
    y = (jnp.dot(h, p_ref[W2_ROW:W2_ROW + CHANNELS, 0:C_OUT],
                 preferred_element_type=jnp.float32)
         + p_ref[B2_ROW:B2_ROW + 1, 0:C_OUT])
    y = y.astype(o_ref.dtype)                               # (DENSE_ROWS, C_OUT)

    # Store only the per-batch valid rows, directly in (B, T_OUT, C_OUT) order.
    # Row starts b*T are multiples of 8 -> sublane-aligned slices.
    for b in range(B):                                      # static unroll (B = 2)
        o_ref[b] = y[b * T:b * T + T_OUT, :]


def _forward_blocks_pallas(x_flat, p_packed):
    # x_flat: (B*T, C_IN) float32 ; p_packed: (P_ROWS, P_LANES) float32
    vmem = pl.BlockSpec(memory_space=pltpu.MemorySpace.VMEM)
    flops = 2 * DENSE_ROWS * (FW * C_IN * CHANNELS + CHANNELS * C_OUT)
    bytes_accessed = (x_flat.size + p_packed.size + B * T_OUT * C_OUT) * 4
    return pl.pallas_call(
        _temporal_block_kernel,
        out_shape=jax.ShapeDtypeStruct((B, T_OUT, C_OUT), jnp.float32),
        in_specs=[vmem, vmem],
        out_specs=vmem,
        cost_estimate=pl.CostEstimate(
            flops=flops, transcendentals=0, bytes_accessed=bytes_accessed),
    )(x_flat, p_packed)


# ---------------- parameter packing (host side, once) -------------------------------
def pack_params(w1, b1, w2, b2):
    # w1: (FW*C_IN, CHANNELS) im2col-fused expand-conv weight (tap-major rows)
    #     (from a PyTorch weight (CHANNELS, C_IN, FW): w.permute(2,1,0).reshape(FW*C_IN, CHANNELS))
    # b1: (1, CHANNELS)
    # w2: (CHANNELS, C_OUT)   1x1 shrink-conv weight (PyTorch weight transposed)
    # b2: (1, C_OUT)
    p = jnp.zeros((P_ROWS, P_LANES), jnp.float32)
    p = p.at[W1_ROW:W1_ROW + FW * C_IN, 0:CHANNELS].set(w1)
    p = p.at[B1_ROW, 0:CHANNELS].set(b1.reshape(CHANNELS))
    p = p.at[W2_ROW:W2_ROW + CHANNELS, 0:C_OUT].set(w2)
    p = p.at[B2_ROW, 0:C_OUT].set(b2.reshape(C_OUT))
    return p


# ---------------- forward() semantics of TemporalModelBase --------------------------
def temporal_model_forward(x, p_packed):
    # x: (B, T, num_joints_in, in_features)
    assert x.ndim == 4
    assert x.shape == (B, T, NUM_JOINTS_IN, IN_FEATURES), x.shape  # compile-time shapes

    # (B,T,J,F) -> (B*T, J*F): contiguous reshape only.  The module's NCT permute is
    # folded into the kernel's channels-on-lanes layout (no XLA transpose kernel).
    x_flat = x.reshape(B * T, NUM_JOINTS_IN * IN_FEATURES)

    y = _forward_blocks_pallas(x_flat, p_packed)            # (B, T_OUT, C_OUT)
    # dropout is identity at inference time.

    # (B, T_OUT, C_OUT) -> (B, T_OUT, J_out, 3): the module's permute-back + view is a
    # free contiguous reshape in this layout.
    return y.reshape(B, T_OUT, NUM_JOINTS_OUT, 3)


def init_params(key):
    k1, k2, k3, k4 = jax.random.split(key, 4)
    w1 = 0.05 * jax.random.normal(k1, (FW * C_IN, CHANNELS), jnp.float32)
    b1 = 0.01 * jax.random.normal(k2, (1, CHANNELS), jnp.float32)
    w2 = 0.05 * jax.random.normal(k3, (CHANNELS, C_OUT), jnp.float32)
    b2 = 0.01 * jax.random.normal(k4, (1, C_OUT), jnp.float32)
    return w1, b1, w2, b2


if __name__ == "__main__":
    key = jax.random.PRNGKey(0)
    kx, kp = jax.random.split(key)
    x = jax.random.normal(kx, (B, T, NUM_JOINTS_IN, IN_FEATURES), jnp.float32)
    w1, b1, w2, b2 = init_params(kp)
    p_packed = pack_params(w1, b1, w2, b2)

    out = jax.block_until_ready(temporal_model_forward(x, p_packed))

    # ---- plain-JAX reference in the PyTorch Conv1d (NCT) convention ----------------
    w1_taps = w1.reshape(FW, C_IN, CHANNELS)                    # [tap, c_in, c_hidden]
    x_nct = jnp.transpose(x.reshape(B, T, C_IN), (0, 2, 1))     # (B, C_IN, T)
    ref = jnp.zeros((B, CHANNELS, T_OUT), jnp.float32)
    for k in range(FW):
        ref = ref + jnp.einsum('ch,bct->bht', w1_taps[k], x_nct[:, :, k:k + T_OUT])
    ref = jnp.maximum(ref + b1.reshape(1, CHANNELS, 1), 0.0)
    ref = jnp.einsum('ho,bht->bot', w2, ref) + b2.reshape(1, C_OUT, 1)
    ref = jnp.transpose(ref, (0, 2, 1)).reshape(B, T_OUT, NUM_JOINTS_OUT, 3)

    assert out.shape == (B, T_OUT, NUM_JOINTS_OUT, 3), out.shape
    assert jnp.allclose(out, ref, atol=1e-4, rtol=1e-4)
    print("KERNEL_OK")
</pallas_src>

<mosaic_0001>
module attributes {stable_mosaic.version = 11 : i64} {
  func.func @_temporal_block_kernel(%arg0: memref<16x32xf32, #tpu.memory_space<vmem>>, %arg1: memref<144x48xf32, #tpu.memory_space<vmem>>, %arg2: memref<2x6x48xf32, #tpu.memory_space<vmem>>) attributes {dimension_semantics = [], scalar_prefetch = 0 : i64, scratch_operands = 0 : i64, tpu.core_type = #tpu.core_type<tc>} {
    %c0 = arith.constant 0 : index
    %c0_0 = arith.constant 0 : index
    %0 = vector.load %arg0[%c0, %c0_0] : memref<16x32xf32, #tpu.memory_space<vmem>>, vector<14x32xf32>
    %c0_1 = arith.constant 0 : index
    %c0_2 = arith.constant 0 : index
    %1 = vector.load %arg1[%c0_1, %c0_2] : memref<144x48xf32, #tpu.memory_space<vmem>>, vector<32x32xf32>
    %cst = arith.constant dense<0.000000e+00> : vector<14x32xf32>
    %2 = tpu.matmul %0, %1, %cst {dimension_numbers = #tpu.dot_dimension_numbers<[1], [0], [0], [1], [0, 0, 1, 1], [], []>} : vector<14x32xf32>, vector<32x32xf32>, vector<14x32xf32> -> vector<14x32xf32>
    %c1 = arith.constant 1 : index
    %c0_3 = arith.constant 0 : index
    %3 = vector.load %arg0[%c1, %c0_3] : memref<16x32xf32, #tpu.memory_space<vmem>>, vector<14x32xf32>
    %c32 = arith.constant 32 : index
    %c0_4 = arith.constant 0 : index
    %4 = vector.load %arg1[%c32, %c0_4] : memref<144x48xf32, #tpu.memory_space<vmem>>, vector<32x32xf32>
    %cst_5 = arith.constant dense<0.000000e+00> : vector<14x32xf32>
    %5 = tpu.matmul %3, %4, %cst_5 {dimension_numbers = #tpu.dot_dimension_numbers<[1], [0], [0], [1], [0, 0, 1, 1], [], []>} : vector<14x32xf32>, vector<32x32xf32>, vector<14x32xf32> -> vector<14x32xf32>
    %6 = arith.addf %2, %5 : vector<14x32xf32>
    %c2 = arith.constant 2 : index
    %c0_6 = arith.constant 0 : index
    %7 = vector.load %arg0[%c2, %c0_6] : memref<16x32xf32, #tpu.memory_space<vmem>>, vector<14x32xf32>
    %c64 = arith.constant 64 : index
    %c0_7 = arith.constant 0 : index
    %8 = vector.load %arg1[%c64, %c0_7] : memref<144x48xf32, #tpu.memory_space<vmem>>, vector<32x32xf32>
    %cst_8 = arith.constant dense<0.000000e+00> : vector<14x32xf32>
    %9 = tpu.matmul %7, %8, %cst_8 {dimension_numbers = #tpu.dot_dimension_numbers<[1], [0], [0], [1], [0, 0, 1, 1], [], []>} : vector<14x32xf32>, vector<32x32xf32>, vector<14x32xf32> -> vector<14x32xf32>
    %10 = arith.addf %6, %9 : vector<14x32xf32>
    %c96 = arith.constant 96 : index
    %c0_9 = arith.constant 0 : index
    %11 = vector.load %arg1[%c96, %c0_9] : memref<144x48xf32, #tpu.memory_space<vmem>>, vector<1x32xf32>
    %12 = vector.broadcast %11 : vector<1x32xf32> to vector<14x32xf32>
    %13 = arith.addf %10, %12 : vector<14x32xf32>
    %cst_10 = arith.constant 0.000000e+00 : f32
    %14 = vector.broadcast %cst_10 : f32 to vector<14x32xf32>
    %15 = arith.maximumf %13, %14 : vector<14x32xf32>
    %c104 = arith.constant 104 : index
    %c0_11 = arith.constant 0 : index
    %16 = vector.load %arg1[%c104, %c0_11] : memref<144x48xf32, #tpu.memory_space<vmem>>, vector<32x48xf32>
    %cst_12 = arith.constant dense<0.000000e+00> : vector<14x48xf32>
    %17 = tpu.matmul %15, %16, %cst_12 {dimension_numbers = #tpu.dot_dimension_numbers<[1], [0], [0], [1], [0, 0, 1, 1], [], []>} : vector<14x32xf32>, vector<32x48xf32>, vector<14x48xf32> -> vector<14x48xf32>
    %c136 = arith.constant 136 : index
    %c0_13 = arith.constant 0 : index
    %18 = vector.load %arg1[%c136, %c0_13] : memref<144x48xf32, #tpu.memory_space<vmem>>, vector<1x48xf32>
    %19 = vector.broadcast %18 : vector<1x48xf32> to vector<14x48xf32>
    %20 = arith.addf %17, %19 : vector<14x48xf32>
    %21 = vector.extract_strided_slice %20 {offsets = [0, 0], sizes = [6, 48], strides = [1, 1]} : vector<14x48xf32> to vector<6x48xf32>
    %c0_14 = arith.constant 0 : index
    %c0_15 = arith.constant 0 : index
    %c0_16 = arith.constant 0 : index
    %22 = vector.load %arg2[%c0_14, %c0_15, %c0_16] : memref<2x6x48xf32, #tpu.memory_space<vmem>>, vector<1x6x48xf32>
    %23 = vector.shape_cast %22 : vector<1x6x48xf32> to vector<6x48xf32>
    %24 = vector.shape_cast %21 : vector<6x48xf32> to vector<1x6x48xf32>
    tpu.vector_store %arg2[%c0_14, %c0_15, %c0_16], %24 {strides = array<i32>} : memref<2x6x48xf32, #tpu.memory_space<vmem>>, vector<1x6x48xf32>,
    %25 = vector.extract_strided_slice %20 {offsets = [8, 0], sizes = [6, 48], strides = [1, 1]} : vector<14x48xf32> to vector<6x48xf32>
    %c1_17 = arith.constant 1 : index
    %c0_18 = arith.constant 0 : index
    %c0_19 = arith.constant 0 : index
    %26 = vector.load %arg2[%c1_17, %c0_18, %c0_19] : memref<2x6x48xf32, #tpu.memory_space<vmem>>, vector<1x6x48xf32>
    %27 = vector.shape_cast %26 : vector<1x6x48xf32> to vector<6x48xf32>
    %28 = vector.shape_cast %25 : vector<6x48xf32> to vector<1x6x48xf32>
    tpu.vector_store %arg2[%c1_17, %c0_18, %c0_19], %28 {strides = array<i32>} : memref<2x6x48xf32, #tpu.memory_space<vmem>>, vector<1x6x48xf32>,
    return
  }
}

</mosaic_0001>

<llo_original>
// kernel: tpu_custom_call.1
$region0: #{tpu_custom_call.1}
  #allocation0 [shape = 'u32[]', space=smem, size = 0x4, offset = 0x4, fixed_abs, tag = 'smem constant byte address 0x4 - core index']
  #allocation1 [shape = 'u32[144,128]{1,0:T(1,128)}', space=vmem, size = 0x12000, scoped, tag = 'internal scratch']
  %s0 = inlined_call_operand.vmem [shape: f32[16,32], index: 0, kind: input, shape index: {}]
  %s1 = inlined_call_operand.vmem [shape: f32[144,48], index: 1, kind: input, shape index: {}]
  %s2 = inlined_call_operand.vmem [shape: f32[2,6,48], index: 2, kind: output, shape index: {}]
  %s3 = sld [smem:[#allocation0]]
  $region18: #{tpu_custom_call.1} parent=0
    _
  %s5 = ssub.s32 1, %s3
  %s6 = scalar_select 0, %s5, %s3
  // Predicated region
  $region2: #{tpu_custom_call.1} parent=0 // pred_check
    _
  $region3: #{tpu_custom_call.1} parent=0 // pred_check_branch
    %8 = sbr.rel (0) target = $region5
  $region4: #{tpu_custom_call.1} parent=0 // pred_region
    _
  $region5: #{tpu_custom_call.1} parent=0 // pred_fallthru
    _
  // Predicated region
  $region6: #{tpu_custom_call.1} parent=0 // pred_check
    _
  $region7: #{tpu_custom_call.1} parent=0 // pred_check_branch
    %10 = sbr.rel (0) target = $region9
  $region8: #{tpu_custom_call.1} parent=0 // pred_region
    _
  $region9: #{tpu_custom_call.1} parent=0 // pred_fallthru
    _
  %v11 = vld [vmem:[%s0] sm:$0xff]
  %v12 = vld [vmem:[%s0 + $0x8] sm:$0x3f]
  %v13 = vld [vmem:[%s1] sm:$0xff]
  %v14 = vld [vmem:[%s1 + $0x8] sm:$0xff]
  %v15 = vld [vmem:[%s1 + $0x10] sm:$0xff]
  %v16 = vld [vmem:[%s1 + $0x18] sm:$0xff]
  %v17 = vld [vmem:[%s0 + $0x1] sm:$0xff]
  %v18 = vld [vmem:[%s0 + $0x9] sm:$0x3f]
  %v19 = vld [vmem:[%s1 + $0x20] sm:$0xff]
  %v20 = vld [vmem:[%s1 + $0x28] sm:$0xff]
  %v21 = vld [vmem:[%s1 + $0x30] sm:$0xff]
  %v22 = vld [vmem:[%s1 + $0x38] sm:$0xff]
  %vm23 = vcmask 261120
  %v25 = vsel %vm23, %v17, 0
  %v28 = vsel %vm23, %v18, 0
  %30 = vmatprep.subr.mxu0 0.0
  %31 = vmatpush1.msra.mxu0 %v19
  %32 = vmatprep.subr.mxu0 0.0
  %33 = vmatpush1.msra.mxu0 %v20
  %34 = vmatprep.subr.mxu0 0.0
  %35 = vmatpush1.msra.mxu0 %v21
  %36 = vmatprep.subr.mxu0 0.0
  %37 = vmatpush1.msra.mxu0 %v22
  %38 = vmatprep.subr.mxu0 0.0
  %39 = vmatpush1.msra.mxu0 0.0
  %40 = vmatprep.subr.mxu0 0.0
  %41 = vmatpush1.msra.mxu0 0.0
  %42 = vmatprep.subr.mxu0 0.0
  %43 = vmatpush1.msra.mxu0 0.0
  %44 = vmatprep.subr.mxu0 0.0
  %45 = vmatpush1.msra.mxu0 0.0
  %46 = vmatprep.subr.mxu0 0.0
  %47 = vmatpush1.msra.mxu0 0.0
  %48 = vmatprep.subr.mxu0 0.0
  %49 = vmatpush1.msra.mxu0 0.0
  %50 = vmatprep.subr.mxu0 0.0
  %51 = vmatpush1.msra.mxu0 0.0
  %52 = vmatprep.subr.mxu0 0.0
  %53 = vmatpush1.msra.mxu0 0.0
  %54 = vmatprep.subr.mxu0 0.0
  %55 = vmatpush1.msra.mxu0 0.0
  %56 = vmatprep.subr.mxu0 0.0
  %57 = vmatpush1.msra.mxu0 0.0
  %58 = vmatprep.subr.mxu0 0.0
  %59 = vmatpush1.msra.mxu0 0.0
  %60 = vmatprep.subr.mxu0 0.0
  %61 = vmatpush1.msra.mxu0 0.0
  %62 = vmatprep.subr.mxu0 0.0
  %63 = vmatpush1.msra.mxu0 0.0
  %64 = vmatprep.subr.mxu0 0.0
  %65 = vmatpush1.msra.mxu0 0.0
  %66 = vmatprep.subr.mxu0 0.0
  %67 = vmatpush1.msra.mxu0 0.0
  %68 = vmatprep.subr.mxu0 0.0
  %69 = vmatpush1.msra.mxu0 0.0
  %70 = vmatprep.subr.mxu0 0.0
  %71 = vmatpush1.msra.mxu0 0.0
  %72 = vmatprep.subr.mxu0 0.0
  %73 = vmatpush1.msra.mxu0 0.0
  %74 = vmatprep.subr.mxu0 0.0
  %75 = vmatpush1.msra.mxu0 0.0
  %76 = vmatprep.subr.mxu0 0.0
  %77 = vmatpush1.msra.mxu0 0.0
  %78 = vmatprep.subr.mxu0 0.0
  %79 = vmatpush1.msra.mxu0 0.0
  %80 = vmatprep.subr.mxu0 0.0
  %81 = vmatpush1.msra.mxu0 0.0
  %82 = vmatprep.subr.mxu0 0.0
  %83 = vmatpush1.msra.mxu0 0.0
  %84 = vmatprep.subr.mxu0 0.0
  %85 = vmatpush1.msra.mxu0 0.0
  %86 = vmatprep.subr.mxu0 0.0
  %87 = vmatpush1.msra.mxu0 0.0
  %88 = vmatprep.subr.mxu0 0.0
  %89 = vmatpush1.msra.mxu0 0.0
  %90 = vmatprep.subr.mxu0 0.0
  %91 = vmatpush1.msra.mxu0 0.0
  %92 = vmatprep.subr.mxu0 0.0
  %93 = vmatpush1.msra.mxu0 0.0
  %94 = vmatprep.mubr.f32.mxu0 0.0
  %95 = vmatmul.mubr.f32.gmra.mrb[0].mxu0 %v25
  %v96 = vpop.f32.mrb[0].mxu0
  %v97 = vadd.f32 0.0, %v96
  %v98 = vpop.f32.mrb[0].mxu0
  %99 = vmatprep.mubr.f32.mxu0 0.0
  %100 = vmatmul.mubr.f32.gmra.mrb[0].mxu0 %v28
  %v101 = vpop.f32.mrb[0].mxu0
  %v102 = vadd.f32 0.0, %v101
  %v103 = vpop.f32.mrb[0].mxu0
  %104 = vdwg.mxu0
  %v106 = vsel %vm23, %v11, 0
  %v109 = vsel %vm23, %v12, 0
  %111 = vmatprep.subr.mxu0 0.0
  %112 = vmatpush1.msra.mxu0 %v13
  %113 = vmatprep.subr.mxu0 0.0
  %114 = vmatpush1.msra.mxu0 %v14
  %115 = vmatprep.subr.mxu0 0.0
  %116 = vmatpush1.msra.mxu0 %v15
  %117 = vmatprep.subr.mxu0 0.0
  %118 = vmatpush1.msra.mxu0 %v16
  %119 = vmatprep.subr.mxu0 0.0
  %120 = vmatpush1.msra.mxu0 0.0
  %121 = vmatprep.subr.mxu0 0.0
  %122 = vmatpush1.msra.mxu0 0.0
  %123 = vmatprep.subr.mxu0 0.0
  %124 = vmatpush1.msra.mxu0 0.0
  %125 = vmatprep.subr.mxu0 0.0
  %126 = vmatpush1.msra.mxu0 0.0
  %127 = vmatprep.subr.mxu0 0.0
  %128 = vmatpush1.msra.mxu0 0.0
  %129 = vmatprep.subr.mxu0 0.0
  %130 = vmatpush1.msra.mxu0 0.0
  %131 = vmatprep.subr.mxu0 0.0
  %132 = vmatpush1.msra.mxu0 0.0
  %133 = vmatprep.subr.mxu0 0.0
  %134 = vmatpush1.msra.mxu0 0.0
  %135 = vmatprep.subr.mxu0 0.0
  %136 = vmatpush1.msra.mxu0 0.0
  %137 = vmatprep.subr.mxu0 0.0
  %138 = vmatpush1.msra.mxu0 0.0
  %139 = vmatprep.subr.mxu0 0.0
  %140 = vmatpush1.msra.mxu0 0.0
  %141 = vmatprep.subr.mxu0 0.0
  %142 = vmatpush1.msra.mxu0 0.0
  %143 = vmatprep.subr.mxu0 0.0
  %144 = vmatpush1.msra.mxu0 0.0
  %145 = vmatprep.subr.mxu0 0.0
  %146 = vmatpush1.msra.mxu0 0.0
  %147 = vmatprep.subr.mxu0 0.0
  %148 = vmatpush1.msra.mxu0 0.0
  %149 = vmatprep.subr.mxu0 0.0
  %150 = vmatpush1.msra.mxu0 0.0
  %151 = vmatprep.subr.mxu0 0.0
  %152 = vmatpush1.msra.mxu0 0.0
  %153 = vmatprep.subr.mxu0 0.0
  %154 = vmatpush1.msra.mxu0 0.0
  %155 = vmatprep.subr.mxu0 0.0
  %156 = vmatpush1.msra.mxu0 0.0
  %157 = vmatprep.subr.mxu0 0.0
  %158 = vmatpush1.msra.mxu0 0.0
  %159 = vmatprep.subr.mxu0 0.0
  %160 = vmatpush1.msra.mxu0 0.0
  %161 = vmatprep.subr.mxu0 0.0
  %162 = vmatpush1.msra.mxu0 0.0
  %163 = vmatprep.subr.mxu0 0.0
  %164 = vmatpush1.msra.mxu0 0.0
  %165 = vmatprep.subr.mxu0 0.0
  %166 = vmatpush1.msra.mxu0 0.0
  %167 = vmatprep.subr.mxu0 0.0
  %168 = vmatpush1.msra.mxu0 0.0
  %169 = vmatprep.subr.mxu0 0.0
  %170 = vmatpush1.msra.mxu0 0.0
  %171 = vmatprep.subr.mxu0 0.0
  %172 = vmatpush1.msra.mxu0 0.0
  %173 = vmatprep.subr.mxu0 0.0
  %174 = vmatpush1.msra.mxu0 0.0
  %175 = vmatprep.mubr.f32.mxu0 0.0
  %176 = vmatmul.mubr.f32.gmra.mrb[0].mxu0 %v106
  %v177 = vpop.f32.mrb[0].mxu0
  %v178 = vadd.f32 %v97, %v177
  %v179 = vpop.f32.mrb[0].mxu0
  %180 = vmatprep.mubr.f32.mxu0 0.0
  %181 = vmatmul.mubr.f32.gmra.mrb[0].mxu0 %v109
  %v182 = vpop.f32.mrb[0].mxu0
  %v183 = vadd.f32 %v102, %v182
  %v184 = vpop.f32.mrb[0].mxu0
  %185 = vdwg.mxu0
  %v186 = vld [vmem:[%s0 + $0x2] sm:$0xff]
  %v187 = vld [vmem:[%s0 + $0xa] sm:$0x3f]
  %v188 = vld [vmem:[%s1 + $0x40] sm:$0xff]
  %v189 = vld [vmem:[%s1 + $0x48] sm:$0xff]
  %v190 = vld [vmem:[%s1 + $0x50] sm:$0xff]
  %v191 = vld [vmem:[%s1 + $0x58] sm:$0xff]
  %v193 = vsel %vm23, %v186, 0
  %v196 = vsel %vm23, %v187, 0
  %198 = vmatprep.subr.mxu0 0.0
  %199 = vmatpush1.msra.mxu0 %v188
  %200 = vmatprep.subr.mxu0 0.0
  %201 = vmatpush1.msra.mxu0 %v189
  %202 = vmatprep.subr.mxu0 0.0
  %203 = vmatpush1.msra.mxu0 %v190
  %204 = vmatprep.subr.mxu0 0.0
  %205 = vmatpush1.msra.mxu0 %v191
  %206 = vmatprep.subr.mxu0 0.0
  %207 = vmatpush1.msra.mxu0 0.0
  %208 = vmatprep.subr.mxu0 0.0
  %209 = vmatpush1.msra.mxu0 0.0
  %210 = vmatprep.subr.mxu0 0.0
  %211 = vmatpush1.msra.mxu0 0.0
  %212 = vmatprep.subr.mxu0 0.0
  %213 = vmatpush1.msra.mxu0 0.0
  %214 = vmatprep.subr.mxu0 0.0
  %215 = vmatpush1.msra.mxu0 0.0
  %216 = vmatprep.subr.mxu0 0.0
  %217 = vmatpush1.msra.mxu0 0.0
  %218 = vmatprep.subr.mxu0 0.0
  %219 = vmatpush1.msra.mxu0 0.0
  %220 = vmatprep.subr.mxu0 0.0
  %221 = vmatpush1.msra.mxu0 0.0
  %222 = vmatprep.subr.mxu0 0.0
  %223 = vmatpush1.msra.mxu0 0.0
  %224 = vmatprep.subr.mxu0 0.0
  %225 = vmatpush1.msra.mxu0 0.0
  %226 = vmatprep.subr.mxu0 0.0
  %227 = vmatpush1.msra.mxu0 0.0
  %228 = vmatprep.subr.mxu0 0.0
  %229 = vmatpush1.msra.mxu0 0.0
  %230 = vmatprep.subr.mxu0 0.0
  %231 = vmatpush1.msra.mxu0 0.0
  %232 = vmatprep.subr.mxu0 0.0
  %233 = vmatpush1.msra.mxu0 0.0
  %234 = vmatprep.subr.mxu0 0.0
  %235 = vmatpush1.msra.mxu0 0.0
  %236 = vmatprep.subr.mxu0 0.0
  %237 = vmatpush1.msra.mxu0 0.0
  %238 = vmatprep.subr.mxu0 0.0
  %239 = vmatpush1.msra.mxu0 0.0
  %240 = vmatprep.subr.mxu0 0.0
  %241 = vmatpush1.msra.mxu0 0.0
  %242 = vmatprep.subr.mxu0 0.0
  %243 = vmatpush1.msra.mxu0 0.0
  %244 = vmatprep.subr.mxu0 0.0
  %245 = vmatpush1.msra.mxu0 0.0
  %246 = vmatprep.subr.mxu0 0.0
  %247 = vmatpush1.msra.mxu0 0.0
  %248 = vmatprep.subr.mxu0 0.0
  %249 = vmatpush1.msra.mxu0 0.0
  %250 = vmatprep.subr.mxu0 0.0
  %251 = vmatpush1.msra.mxu0 0.0
  %252 = vmatprep.subr.mxu0 0.0
  %253 = vmatpush1.msra.mxu0 0.0
  %254 = vmatprep.subr.mxu0 0.0
  %255 = vmatpush1.msra.mxu0 0.0
  %256 = vmatprep.subr.mxu0 0.0
  %257 = vmatpush1.msra.mxu0 0.0
  %258 = vmatprep.subr.mxu0 0.0
  %259 = vmatpush1.msra.mxu0 0.0
  %260 = vmatprep.subr.mxu0 0.0
  %261 = vmatpush1.msra.mxu0 0.0
  %262 = vmatprep.mubr.f32.mxu0 0.0
  %263 = vmatmul.mubr.f32.gmra.mrb[0].mxu0 %v193
  %v264 = vpop.f32.mrb[0].mxu0
  %v265 = vadd.f32 0.0, %v264
  %v266 = vpop.f32.mrb[0].mxu0
  %267 = vmatprep.mubr.f32.mxu0 0.0
  %268 = vmatmul.mubr.f32.gmra.mrb[0].mxu0 %v196
  %v269 = vpop.f32.mrb[0].mxu0
  %v270 = vadd.f32 0.0, %v269
  %v271 = vpop.f32.mrb[0].mxu0
  %272 = vdwg.mxu0
  %v273 = vadd.f32 %v178, %v265
  %v274 = vadd.f32 %v183, %v270
  %v275 = vld [vmem:[%s1 + $0x60] sm:$0x1]
  %v276 = vlaneseq
  %v277 = vshrl.u32 %v276, 7
  %v278 = vsub.s32 0, %v277
  %v279 = vrot.slane %v275, %v278
  %v280 = vadd.f32 %v273, %v279
  %v281 = vadd.f32 %v274, %v279
  %v282 = vmax.f32 %v280, 0.0
  %v283 = vmax.f32 %v281, 0.0
  %v284 = vld [vmem:[%s1 + $0x68] sm:$0xff]
  %v285 = vld [vmem:[%s1 + $0x70] sm:$0xff]
  %v286 = vld [vmem:[%s1 + $0x78] sm:$0xff]
  %v287 = vld [vmem:[%s1 + $0x80] sm:$0xff]
  %v288 = vld [vmem:[%s1 + $0x88] sm:$0x1]
  %v289 = vlaneseq
  %v290 = vshrl.u32 %v289, 7
  %v291 = vsub.s32 0, %v290
  %v292 = vrot.slane %v288, %v291
  %v294 = vsel %vm23, %v282, 0
  %v297 = vsel %vm23, %v283, 0
  %299 = vmatprep.subr.mxu0 0.0
  %300 = vmatpush1.msra.mxu0 %v284
  %301 = vmatprep.subr.mxu0 0.0
  %302 = vmatpush1.msra.mxu0 %v285
  %303 = vmatprep.subr.mxu0 0.0
  %304 = vmatpush1.msra.mxu0 %v286
  %305 = vmatprep.subr.mxu0 0.0
  %306 = vmatpush1.msra.mxu0 %v287
  %307 = vmatprep.subr.mxu0 0.0
  %308 = vmatpush1.msra.mxu0 0.0
  %309 = vmatprep.subr.mxu0 0.0
  %310 = vmatpush1.msra.mxu0 0.0
  %311 = vmatprep.subr.mxu0 0.0
  %312 = vmatpush1.msra.mxu0 0.0
  %313 = vmatprep.subr.mxu0 0.0
  %314 = vmatpush1.msra.mxu0 0.0
  %315 = vmatprep.subr.mxu0 0.0
  %316 = vmatpush1.msra.mxu0 0.0
  %317 = vmatprep.subr.mxu0 0.0
  %318 = vmatpush1.msra.mxu0 0.0
  %319 = vmatprep.subr.mxu0 0.0
  %320 = vmatpush1.msra.mxu0 0.0
  %321 = vmatprep.subr.mxu0 0.0
  %322 = vmatpush1.msra.mxu0 0.0
  %323 = vmatprep.subr.mxu0 0.0
  %324 = vmatpush1.msra.mxu0 0.0
  %325 = vmatprep.subr.mxu0 0.0
  %326 = vmatpush1.msra.mxu0 0.0
  %327 = vmatprep.subr.mxu0 0.0
  %328 = vmatpush1.msra.mxu0 0.0
  %329 = vmatprep.subr.mxu0 0.0
  %330 = vmatpush1.msra.mxu0 0.0
  %331 = vmatprep.subr.mxu0 0.0
  %332 = vmatpush1.msra.mxu0 0.0
  %333 = vmatprep.subr.mxu0 0.0
  %334 = vmatpush1.msra.mxu0 0.0
  %335 = vmatprep.subr.mxu0 0.0
  %336 = vmatpush1.msra.mxu0 0.0
  %337 = vmatprep.subr.mxu0 0.0
  %338 = vmatpush1.msra.mxu0 0.0
  %339 = vmatprep.subr.mxu0 0.0
  %340 = vmatpush1.msra.mxu0 0.0
  %341 = vmatprep.subr.mxu0 0.0
  %342 = vmatpush1.msra.mxu0 0.0
  %343 = vmatprep.subr.mxu0 0.0
  %344 = vmatpush1.msra.mxu0 0.0
  %345 = vmatprep.subr.mxu0 0.0
  %346 = vmatpush1.msra.mxu0 0.0
  %347 = vmatprep.subr.mxu0 0.0
  %348 = vmatpush1.msra.mxu0 0.0
  %349 = vmatprep.subr.mxu0 0.0
  %350 = vmatpush1.msra.mxu0 0.0
  %351 = vmatprep.subr.mxu0 0.0
  %352 = vmatpush1.msra.mxu0 0.0
  %353 = vmatprep.subr.mxu0 0.0
  %354 = vmatpush1.msra.mxu0 0.0
  %355 = vmatprep.subr.mxu0 0.0
  %356 = vmatpush1.msra.mxu0 0.0
  %357 = vmatprep.subr.mxu0 0.0
  %358 = vmatpush1.msra.mxu0 0.0
  %359 = vmatprep.subr.mxu0 0.0
  %360 = vmatpush1.msra.mxu0 0.0
  %361 = vmatprep.subr.mxu0 0.0
  %362 = vmatpush1.msra.mxu0 0.0
  %363 = vmatprep.mubr.f32.mxu0 0.0
  %364 = vmatmul.mubr.f32.gmra.mrb[0].mxu0 %v294
  %v365 = vpop.f32.mrb[0].mxu0
  %v366 = vadd.f32 %v292, %v365
  %v367 = vpop.f32.mrb[0].mxu0
  %368 = vmatprep.mubr.f32.mxu0 0.0
  %369 = vmatmul.mubr.f32.gmra.mrb[0].mxu0 %v297
  %v370 = vpop.f32.mrb[0].mxu0
  %v371 = vadd.f32 %v292, %v370
  %v372 = vpop.f32.mrb[0].mxu0
  %373 = vdwg.mxu0
  %vm374 = vcmask 390144
  %375 = vst.msk [vmem:[%s2] sm:$0x3f] %vm374, %v366
  %s376 = scalar_lea.vmem %s2, 8
  %377 = vst.msk [vmem:[%s376] sm:$0x3f] %vm374, %v371
  // Predicated region
  $region10: #{tpu_custom_call.1} parent=0 // pred_check
    _
  $region11: #{tpu_custom_call.1} parent=0 // pred_check_branch
    %379 = sbr.rel (0) target = $region13
  $region12: #{tpu_custom_call.1} parent=0 // pred_region
    _
  $region13: #{tpu_custom_call.1} parent=0 // pred_fallthru
    _
  // Predicated region
  $region14: #{tpu_custom_call.1} parent=0 // pred_check
    _
  $region15: #{tpu_custom_call.1} parent=0 // pred_check_branch
    %381 = sbr.rel (0) target = $region17
  $region16: #{tpu_custom_call.1} parent=0 // pred_region
    _
  $region17: #{tpu_custom_call.1} parent=0 // pred_fallthru
    _

</llo_original>
